<compile_context>
chip_gen: v7x
topology: tpu7x:2x2x1
jax: 0.10.0
libtpu: 0.0.40
codegen_flags: <defaults>
</compile_context>

<pallas_src>
import functools

import jax
import jax.numpy as jnp
from jax.experimental import pallas as pl
from jax.experimental.pallas import tpu as pltpu


def _round_up(x, m):
    return (x + m - 1) // m * m


def _vmem_limit_bytes(per_step_bytes):
    """Scoped-VMEM budget: double-buffered pipeline + headroom, capped for v7x (64 MiB)."""
    return int(min(max(2 * per_step_bytes + (4 << 20), 8 << 20), 48 << 20))


# -----------------------------------------------------------------------------------
# Tiled pass 1: conv + bias + per-tile BN statistics.
#   xT_ref : (K, m_tile)   bf16 im2col columns (M padded to Mp only)
#   wT_ref : (Cout, K)     bf16 packed conv weights (resident across the grid)
#   b_ref  : (Cout, 1)     f32 conv bias
#   yT_ref : (Cout, m_tile) f32 conv output, M on the LANE axis -> lane-dense stores
#   sum/ssq: (1, Cout, 1)  per-tile channel sum / centered sum of squares
# -----------------------------------------------------------------------------------
def conv_stats_kernel(xT_ref, wT_ref, b_ref, yT_ref, sum_ref, ssq_ref, *,
                      m_total, m_tile):
    i = pl.program_id(0)

    # Single MXU matmul per tile, bf16 inputs, f32 accumulation.
    acc = jnp.dot(wT_ref[...], xT_ref[...], preferred_element_type=jnp.float32)
    acc = acc + b_ref[...]                                    # (Cout, m_tile)
    yT_ref[...] = acc

    # Mask M-padding columns (only the last tile can be partial).
    col = jax.lax.broadcasted_iota(jnp.int32, (1, m_tile), 1) + i * m_tile
    valid = col < m_total                                     # (1, m_tile)
    cnt = jnp.minimum(m_tile, m_total - i * m_tile).astype(jnp.float32)

    masked = jnp.where(valid, acc, 0.0)
    tsum = jnp.sum(masked, axis=1, keepdims=True)             # (Cout, 1)
    tmean = tsum / cnt
    centered = jnp.where(valid, acc - tmean, 0.0)             # centered -> no E[x^2] cancel
    tssq = jnp.sum(centered * centered, axis=1, keepdims=True)

    sum_ref[...] = tsum[None]                                 # (1, Cout, 1)
    ssq_ref[...] = tssq[None]


# -----------------------------------------------------------------------------------
# Fully fused single-call path (whole problem fits in one tile):
# conv + bias + batch statistics + BN affine in one kernel, no stats HBM round trip.
# -----------------------------------------------------------------------------------
def conv_bn_fused_kernel(xT_ref, wT_ref, b_ref, gamma_ref, beta_ref, o_ref, *,
                         m_total, eps):
    acc = jnp.dot(wT_ref[...], xT_ref[...], preferred_element_type=jnp.float32)
    acc = acc + b_ref[...]                                    # (Cout, Mp)

    mp = acc.shape[1]
    col = jax.lax.broadcasted_iota(jnp.int32, (1, mp), 1)
    valid = col < m_total
    inv_n = jnp.float32(1.0 / m_total)

    masked = jnp.where(valid, acc, 0.0)
    mean = jnp.sum(masked, axis=1, keepdims=True) * inv_n     # (Cout, 1)
    centered = jnp.where(valid, acc - mean, 0.0)
    var = jnp.sum(centered * centered, axis=1, keepdims=True) * inv_n

    scale = gamma_ref[...] * jax.lax.rsqrt(var + eps)         # (Cout, 1)
    shift = beta_ref[...] - mean * scale
    o_ref[...] = acc * scale + shift
    # NOTE: no ReLU here -- the PyTorch forward discards the result of `self.relu(x)`.


def conv_block_forward(x_nchw, conv_w, conv_b, bn_gamma, bn_beta, *,
                       stride, padding, eps=1e-5, m_tile=1024,
                       compute_dtype=jnp.bfloat16):
    """ConvBlock forward: Conv2d + training-mode BatchNorm2d (no ReLU applied)."""
    N, Cin, H, W = x_nchw.shape
    Cout, _, KH, KW = conv_w.shape

    Hout = (H + 2 * padding - KH) // stride + 1
    Wout = (W + 2 * padding - KW) // stride + 1
    M = N * Hout * Wout
    K = KH * KW * Cin

    # ---- im2col once in the wrapper (XLA fuses pad + slices + transpose) -------------
    x = jnp.transpose(x_nchw, (0, 2, 3, 1)).astype(jnp.float32)          # NHWC
    x = jnp.pad(x, ((0, 0), (padding, padding), (padding, padding), (0, 0)))
    cols = []
    for kh in range(KH):
        for kw in range(KW):
            cols.append(x[:, kh:kh + (Hout - 1) * stride + 1:stride,
                            kw:kw + (Wout - 1) * stride + 1:stride, :])
    patches = jnp.concatenate(cols, axis=-1).reshape(M, K)               # (M, K)

    # ---- pack operands: only M is padded (to the tile size); K/Cout stay exact -------
    m_tile = max(128, min(_round_up(m_tile, 128), _round_up(M, 128)))
    Mp = _round_up(M, m_tile)
    num_tiles = Mp // m_tile

    xT = jnp.pad(patches.astype(compute_dtype).T, ((0, 0), (0, Mp - M)))  # (K, Mp) bf16
    wT = jnp.transpose(conv_w, (0, 2, 3, 1)).reshape(Cout, K).astype(compute_dtype)
    b2 = conv_b.astype(jnp.float32).reshape(Cout, 1)
    g2 = bn_gamma.astype(jnp.float32).reshape(Cout, 1)
    bt2 = bn_beta.astype(jnp.float32).reshape(Cout, 1)

    itemsize = jnp.dtype(compute_dtype).itemsize
    cost = pl.CostEstimate(
        flops=2 * M * K * Cout,
        transcendentals=0,
        bytes_accessed=int(xT.size * itemsize + wT.size * itemsize
                           + (Cout * Mp + 4 * Cout) * 4))

    if num_tiles == 1:
        # Toy-sized / single-tile case: one fused call (conv + stats + BN apply).
        outT = pl.pallas_call(
            functools.partial(conv_bn_fused_kernel, m_total=M, eps=eps),
            out_shape=jax.ShapeDtypeStruct((Cout, Mp), jnp.float32),
            compiler_params=pltpu.CompilerParams(
                vmem_limit_bytes=_vmem_limit_bytes(
                    xT.size * itemsize + wT.size * itemsize + Cout * Mp * 4)),
            cost_estimate=cost,
        )(xT, wT, b2, g2, bt2)
    else:
        # Production-sized case: tiled conv+stats pass, tiny combine, fused epilogue.
        per_step = ((K * m_tile * itemsize + Cout * m_tile * 4) * 2      # double-buffered
                    + Cout * K * itemsize * 2 + Cout * 4 * 8)
        # TODO(synk): for large Cin/Cout add a trailing "arbitrary" K grid axis with an
        # f32 VMEM accumulator, and pl.Buffered(1) on the resident w/b blocks, to stay
        # inside v7x's 64 MiB physical / 32 MiB scoped VMEM.
        convT, tile_sum, tile_ssq = pl.pallas_call(
            functools.partial(conv_stats_kernel, m_total=M, m_tile=m_tile),
            grid=(num_tiles,),
            in_specs=[
                pl.BlockSpec((K, m_tile), lambda i: (0, i)),
                pl.BlockSpec((Cout, K), lambda i: (0, 0)),
                pl.BlockSpec((Cout, 1), lambda i: (0, 0)),
            ],
            out_specs=[
                pl.BlockSpec((Cout, m_tile), lambda i: (0, i)),
                pl.BlockSpec((1, Cout, 1), lambda i: (i, 0, 0)),
                pl.BlockSpec((1, Cout, 1), lambda i: (i, 0, 0)),
            ],
            out_shape=[
                jax.ShapeDtypeStruct((Cout, Mp), jnp.float32),
                jax.ShapeDtypeStruct((num_tiles, Cout, 1), jnp.float32),
                jax.ShapeDtypeStruct((num_tiles, Cout, 1), jnp.float32),
            ],
            compiler_params=pltpu.CompilerParams(
                dimension_semantics=("parallel",),
                vmem_limit_bytes=_vmem_limit_bytes(per_step)),
            cost_estimate=cost,
        )(xT, wT, b2)

        # ---- tiny cross-tile stats combine (Chan's parallel variance) ----------------
        tile_sum = tile_sum[:, :, 0]                                     # (T, Cout)
        tile_ssq = tile_ssq[:, :, 0]
        counts = jnp.minimum(m_tile, M - jnp.arange(num_tiles) * m_tile)
        counts = counts.astype(jnp.float32)[:, None]                     # (T, 1)
        mean = jnp.sum(tile_sum, axis=0) / M                             # (Cout,)
        tile_means = tile_sum / counts
        var = (jnp.sum(tile_ssq, axis=0)
               + jnp.sum(counts * (tile_means - mean[None, :]) ** 2, axis=0)) / M

        scale = bn_gamma.astype(jnp.float32) * jax.lax.rsqrt(var + eps)
        shift = bn_beta.astype(jnp.float32) - mean * scale
        # BN affine folded into the plain-JAX epilogue so XLA fuses it with the
        # slice / reshape / transpose below (no second Pallas pass, no extra slab).
        outT = convT * scale[:, None] + shift[:, None]

    out = outT[:, :M].reshape(Cout, N, Hout, Wout)
    return jnp.transpose(out, (1, 0, 2, 3))                              # NCHW


def reference_forward(x_nchw, conv_w, conv_b, bn_gamma, bn_beta, *,
                      stride, padding, eps=1e-5):
    """Plain-JAX f32 reference of the same forward (training-mode BN, no ReLU)."""
    y = jax.lax.conv_general_dilated(
        x_nchw.astype(jnp.float32), conv_w.astype(jnp.float32),
        window_strides=(stride, stride),
        padding=[(padding, padding), (padding, padding)],
        dimension_numbers=('NCHW', 'OIHW', 'NCHW'))
    y = y + conv_b[None, :, None, None]
    mean = jnp.mean(y, axis=(0, 2, 3), keepdims=True)
    var = jnp.mean((y - mean) ** 2, axis=(0, 2, 3), keepdims=True)
    return ((y - mean) * jax.lax.rsqrt(var + eps)
            * bn_gamma[None, :, None, None] + bn_beta[None, :, None, None])


if __name__ == "__main__":
    # ConvBlock(in_dim=4, out_dim=8, kernel_size=3, stride=1, padding=1)
    in_dim, out_dim, kernel_size, stride, padding = 4, 8, 3, 1, 1
    N, H, W = 2, 16, 16

    key = jax.random.PRNGKey(0)
    kx, kw, kb = jax.random.split(key, 3)

    x = jax.random.normal(kx, (N, in_dim, H, W), dtype=jnp.float32)
    conv_w = 0.1 * jax.random.normal(kw, (out_dim, in_dim, kernel_size, kernel_size),
                                     dtype=jnp.float32)
    conv_b = 0.1 * jax.random.normal(kb, (out_dim,), dtype=jnp.float32)
    bn_gamma = jnp.ones((out_dim,), jnp.float32)   # PyTorch BatchNorm2d default init
    bn_beta = jnp.zeros((out_dim,), jnp.float32)

    ref = reference_forward(x, conv_w, conv_b, bn_gamma, bn_beta,
                            stride=stride, padding=padding)

    # bf16 matmul inputs with f32 accumulation -> tolerance appropriate for bf16.
    tol = 3e-2

    # Path 1: fused single-call kernel (M = 512 fits in one tile).
    fwd_fused = jax.jit(functools.partial(conv_block_forward,
                                          stride=stride, padding=padding))
    out = jax.block_until_ready(fwd_fused(x, conv_w, conv_b, bn_gamma, bn_beta))
    assert out.shape == (N, out_dim, H, W), out.shape
    assert jnp.allclose(out, ref, rtol=tol, atol=tol), \
        float(jnp.max(jnp.abs(out - ref)))

    # Path 2: tiled production path (forced here with a small tile -> 4 grid steps).
    fwd_tiled = jax.jit(functools.partial(conv_block_forward,
                                          stride=stride, padding=padding, m_tile=128))
    out_tiled = jax.block_until_ready(fwd_tiled(x, conv_w, conv_b, bn_gamma, bn_beta))
    assert out_tiled.shape == (N, out_dim, H, W), out_tiled.shape
    assert jnp.allclose(out_tiled, ref, rtol=tol, atol=tol), \
        float(jnp.max(jnp.abs(out_tiled - ref)))

    print("KERNEL_OK")
</pallas_src>

<mosaic_0001>
module attributes {stable_mosaic.version = 11 : i64} {
  func.func @conv_bn_fused_kernel(%arg0: memref<36x512xbf16, #tpu.memory_space<vmem>>, %arg1: memref<8x36xbf16, #tpu.memory_space<vmem>>, %arg2: memref<8x1xf32, #tpu.memory_space<vmem>>, %arg3: memref<8x1xf32, #tpu.memory_space<vmem>>, %arg4: memref<8x1xf32, #tpu.memory_space<vmem>>, %arg5: memref<8x512xf32, #tpu.memory_space<vmem>>) attributes {dimension_semantics = [], scalar_prefetch = 0 : i64, scratch_operands = 0 : i64, tpu.core_type = #tpu.core_type<tc>} {
    %c0 = arith.constant 0 : index
    %c0_0 = arith.constant 0 : index
    %0 = vector.load %arg1[%c0, %c0_0] : memref<8x36xbf16, #tpu.memory_space<vmem>>, vector<8x36xbf16>
    %c0_1 = arith.constant 0 : index
    %c0_2 = arith.constant 0 : index
    %1 = vector.load %arg0[%c0_1, %c0_2] : memref<36x512xbf16, #tpu.memory_space<vmem>>, vector<36x512xbf16>
    %cst = arith.constant dense<0.000000e+00> : vector<8x512xf32>
    %2 = tpu.matmul %0, %1, %cst {dimension_numbers = #tpu.dot_dimension_numbers<[1], [0], [0], [1], [0, 0, 1, 1], [], []>} : vector<8x36xbf16>, vector<36x512xbf16>, vector<8x512xf32> -> vector<8x512xf32>
    %c0_3 = arith.constant 0 : index
    %c0_4 = arith.constant 0 : index
    %3 = vector.load %arg2[%c0_3, %c0_4] : memref<8x1xf32, #tpu.memory_space<vmem>>, vector<8x1xf32>
    %4 = vector.broadcast %3 : vector<8x1xf32> to vector<8x512xf32>
    %5 = arith.addf %2, %4 : vector<8x512xf32>
    %6 = tpu.iota {dimensions = array<i32: 1>} : vector<1x512xi32>
    %c512_i32 = arith.constant 512 : i32
    %7 = vector.broadcast %c512_i32 : i32 to vector<1x512xi32>
    %8 = arith.cmpi slt, %6, %7 : vector<1x512xi32>
    %cst_5 = arith.constant 0.000000e+00 : f32
    %9 = vector.shape_cast %8 : vector<1x512xi1> to vector<1x512xi1>
    %10 = vector.broadcast %9 : vector<1x512xi1> to vector<8x512xi1>
    %11 = vector.broadcast %cst_5 : f32 to vector<8x512xf32>
    %12 = arith.select %10, %5, %11 : vector<8x512xi1>, vector<8x512xf32>
    %cst_6 = arith.constant dense<0.000000e+00> : vector<8xf32>
    %13 = vector.multi_reduction <add>, %12, %cst_6 [1] : vector<8x512xf32> to vector<8xf32>
    %14 = vector.shape_cast %13 : vector<8xf32> to vector<8x1xf32>
    %cst_7 = arith.constant 0.001953125 : f32
    %15 = vector.broadcast %cst_7 : f32 to vector<8x1xf32>
    %16 = arith.mulf %14, %15 : vector<8x1xf32>
    %17 = vector.broadcast %16 : vector<8x1xf32> to vector<8x512xf32>
    %18 = arith.subf %5, %17 : vector<8x512xf32>
    %cst_8 = arith.constant 0.000000e+00 : f32
    %19 = vector.shape_cast %8 : vector<1x512xi1> to vector<1x512xi1>
    %20 = vector.broadcast %19 : vector<1x512xi1> to vector<8x512xi1>
    %21 = vector.broadcast %cst_8 : f32 to vector<8x512xf32>
    %22 = arith.select %20, %18, %21 : vector<8x512xi1>, vector<8x512xf32>
    %23 = arith.mulf %22, %22 : vector<8x512xf32>
    %cst_9 = arith.constant dense<0.000000e+00> : vector<8xf32>
    %24 = vector.multi_reduction <add>, %23, %cst_9 [1] : vector<8x512xf32> to vector<8xf32>
    %25 = vector.shape_cast %24 : vector<8xf32> to vector<8x1xf32>
    %cst_10 = arith.constant 0.001953125 : f32
    %26 = vector.broadcast %cst_10 : f32 to vector<8x1xf32>
    %27 = arith.mulf %25, %26 : vector<8x1xf32>
    %c0_11 = arith.constant 0 : index
    %c0_12 = arith.constant 0 : index
    %28 = vector.load %arg3[%c0_11, %c0_12] : memref<8x1xf32, #tpu.memory_space<vmem>>, vector<8x1xf32>
    %cst_13 = arith.constant 9.99999974E-6 : f32
    %29 = vector.broadcast %cst_13 : f32 to vector<8x1xf32>
    %30 = arith.addf %27, %29 : vector<8x1xf32>
    %31 = math.rsqrt %30 : vector<8x1xf32>
    %32 = arith.mulf %28, %31 : vector<8x1xf32>
    %c0_14 = arith.constant 0 : index
    %c0_15 = arith.constant 0 : index
    %33 = vector.load %arg4[%c0_14, %c0_15] : memref<8x1xf32, #tpu.memory_space<vmem>>, vector<8x1xf32>
    %34 = arith.mulf %16, %32 : vector<8x1xf32>
    %35 = arith.subf %33, %34 : vector<8x1xf32>
    %36 = vector.broadcast %32 : vector<8x1xf32> to vector<8x512xf32>
    %37 = arith.mulf %5, %36 : vector<8x512xf32>
    %38 = vector.broadcast %35 : vector<8x1xf32> to vector<8x512xf32>
    %39 = arith.addf %37, %38 : vector<8x512xf32>
    %c0_16 = arith.constant 0 : index
    %c0_17 = arith.constant 0 : index
    %40 = vector.load %arg5[%c0_16, %c0_17] : memref<8x512xf32, #tpu.memory_space<vmem>>, vector<8x512xf32>
    tpu.vector_store %arg5[%c0_16, %c0_17], %39 {strides = array<i32>} : memref<8x512xf32, #tpu.memory_space<vmem>>, vector<8x512xf32>,
    return
  }
}

</mosaic_0001>

<llo_original>
// kernel: conv_block_forward.1
$region0: #{conv_block_forward.1}
  #allocation0 [shape = 'u32[]', space=smem, size = 0x4, offset = 0x4, fixed_abs, tag = 'smem constant byte address 0x4 - core index']
  #allocation1 [shape = 'u32[144,128]{1,0:T(1,128)}', space=vmem, size = 0x12000, scoped, tag = 'internal scratch']
  %s0 = inlined_call_operand.vmem [shape: bf16[36,512], index: 0, kind: input, shape index: {}]
  %s1 = inlined_call_operand.vmem [shape: bf16[8,36], index: 1, kind: input, shape index: {}]
  %s2 = inlined_call_operand.vmem [shape: f32[8,1], index: 2, kind: input, shape index: {}]
  %s3 = inlined_call_operand.vmem [shape: f32[8,1], index: 3, kind: input, shape index: {}]
  %s4 = inlined_call_operand.vmem [shape: f32[8,1], index: 4, kind: input, shape index: {}]
  %s5 = inlined_call_operand.vmem [shape: f32[8,512], index: 5, kind: output, shape index: {}]
  %s6 = sld [smem:[#allocation0]]
  $region30: #{conv_block_forward.1} parent=0
    _
  %s8 = ssub.s32 1, %s6
  %s9 = scalar_select 0, %s8, %s6
  // Predicated region
  $region2: #{conv_block_forward.1} parent=0 // pred_check
    _
  $region3: #{conv_block_forward.1} parent=0 // pred_check_branch
    %11 = sbr.rel (0) target = $region5
  $region4: #{conv_block_forward.1} parent=0 // pred_region
    _
  $region5: #{conv_block_forward.1} parent=0 // pred_fallthru
    _
  // Predicated region
  $region6: #{conv_block_forward.1} parent=0 // pred_check
    _
  $region7: #{conv_block_forward.1} parent=0 // pred_check_branch
    %13 = sbr.rel (0) target = $region9
  $region8: #{conv_block_forward.1} parent=0 // pred_region
    _
  $region9: #{conv_block_forward.1} parent=0 // pred_fallthru
    _
  // Predicated region
  $region10: #{conv_block_forward.1} parent=0 // pred_check
    _
  $region11: #{conv_block_forward.1} parent=0 // pred_check_branch
    %15 = sbr.rel (0) target = $region13
  $region12: #{conv_block_forward.1} parent=0 // pred_region
    _
  $region13: #{conv_block_forward.1} parent=0 // pred_fallthru
    _
  // Predicated region
  $region14: #{conv_block_forward.1} parent=0 // pred_check
    _
  $region15: #{conv_block_forward.1} parent=0 // pred_check_branch
    %17 = sbr.rel (0) target = $region17
  $region16: #{conv_block_forward.1} parent=0 // pred_region
    _
  $region17: #{conv_block_forward.1} parent=0 // pred_fallthru
    _
  // Predicated region
  $region18: #{conv_block_forward.1} parent=0 // pred_check
    _
  $region19: #{conv_block_forward.1} parent=0 // pred_check_branch
    %19 = sbr.rel (0) target = $region21
  $region20: #{conv_block_forward.1} parent=0 // pred_region
    _
  $region21: #{conv_block_forward.1} parent=0 // pred_fallthru
    _
  %v21 = vld [vmem:[%s1] sm:$0xf]
  %v22 = vld [vmem:[%s0] sm:$0xff]
  %v23 = vld [vmem:[%s0 + $0x8] sm:$0xff]
  %v24 = vld [vmem:[%s0 + $0x10] sm:$0xff]
  %v25 = vld [vmem:[%s0 + $0x18] sm:$0xff]
  %v26 = vld [vmem:[%s0 + $0x20] sm:$0xff]
  %v27 = vld [vmem:[%s0 + $0x28] sm:$0xff]
  %v28 = vld [vmem:[%s0 + $0x30] sm:$0xff]
  %v29 = vld [vmem:[%s0 + $0x38] sm:$0xff]
  %v30 = vld [vmem:[%s0 + $0x40] sm:$0x33]
  %v31 = vld [vmem:[%s0 + $0x48] sm:$0x33]
  %v32 = vld [vmem:[%s2] sm:$0xff]
  %34 = vset.pattern.permute.xlu0 0
  %35 = vperm.xlu0 %34, %v32
  %v36 = vpop.permute.xlu0 %35
  %v48 = vunpack.c.l.b16 %v22
  %v49 = vunpack.c.h.b16 %v22
  %v50 = vunpack.c.l.b16 %v23
  %v51 = vunpack.c.h.b16 %v23
  %v52 = vunpack.c.l.b16 %v24
  %v53 = vunpack.c.h.b16 %v24
  %v54 = vunpack.c.l.b16 %v25
  %v55 = vunpack.c.h.b16 %v25
  %v56 = vunpack.c.l.b16 %v26
  %v57 = vunpack.c.h.b16 %v26
  %v58 = vunpack.c.l.b16 %v27
  %v59 = vunpack.c.h.b16 %v27
  %v60 = vunpack.c.l.b16 %v28
  %v61 = vunpack.c.h.b16 %v28
  %v62 = vunpack.c.l.b16 %v29
  %v63 = vunpack.c.h.b16 %v29
  %v64 = vunpack.c.l.b16 %v30
  %v65 = vunpack.c.h.b16 %v30
  %v66 = vunpack.c.l.b16 %v31
  %v67 = vunpack.c.h.b16 %v31
  %v68 = vpack.c.b16 %v52, %v48
  %v69 = vpack.c.b16 %v53, %v49
  %v70 = vpack.c.b16 %v54, %v50
  %v71 = vpack.c.b16 %v55, %v51
  %v72 = vpack.c.b16 %v60, %v56
  %v73 = vpack.c.b16 %v61, %v57
  %v74 = vpack.c.b16 %v62, %v58
  %v75 = vpack.c.b16 %v63, %v59
  %v76 = vpack.c.b16 %v64, %v64
  %v77 = vpack.c.b16 %v65, %v65
  %v78 = vpack.c.b16 %v66, %v66
  %v79 = vpack.c.b16 %v67, %v67
  %vm88 = vcmask 293888
  %v90 = vsel %vm88, %v21, 0
  %vm92 = vcmask 1041408
  %v94 = vsel %vm92, %v76, 0
  %v97 = vsel %vm92, %v77, 0
  %v100 = vsel %vm92, %v78, 0
  %v103 = vsel %vm92, %v79, 0
  %105 = vmatprep.subr.bf16.mxu0 %v69
  %106 = vmatpush1.bf16.msra.mxu0 %v68
  %107 = vmatprep.subr.bf16.mxu0 %v73
  %108 = vmatpush1.bf16.msra.mxu0 %v72
  %109 = vmatprep.subr.bf16.mxu0 %v97
  %110 = vmatpush1.bf16.msra.mxu0 %v94
  %111 = vmatprep.subr.bf16.mxu0 0
  %112 = vmatpush1.bf16.msra.mxu0 0
  %113 = vmatprep.subr.bf16.mxu0 0
  %114 = vmatpush1.bf16.msra.mxu0 0
  %115 = vmatprep.subr.bf16.mxu0 0
  %116 = vmatpush1.bf16.msra.mxu0 0
  %117 = vmatprep.subr.bf16.mxu0 0
  %118 = vmatpush1.bf16.msra.mxu0 0
  %119 = vmatprep.subr.bf16.mxu0 0
  %120 = vmatpush1.bf16.msra.mxu0 0
  %121 = vmatprep.subr.bf16.mxu0 0
  %122 = vmatpush1.bf16.msra.mxu0 0
  %123 = vmatprep.subr.bf16.mxu0 0
  %124 = vmatpush1.bf16.msra.mxu0 0
  %125 = vmatprep.subr.bf16.mxu0 0
  %126 = vmatpush1.bf16.msra.mxu0 0
  %127 = vmatprep.subr.bf16.mxu0 0
  %128 = vmatpush1.bf16.msra.mxu0 0
  %129 = vmatprep.subr.bf16.mxu0 0
  %130 = vmatpush1.bf16.msra.mxu0 0
  %131 = vmatprep.subr.bf16.mxu0 0
  %132 = vmatpush1.bf16.msra.mxu0 0
  %133 = vmatprep.subr.bf16.mxu0 0
  %134 = vmatpush1.bf16.msra.mxu0 0
  %135 = vmatprep.subr.bf16.mxu0 0
  %136 = vmatpush1.bf16.msra.mxu0 0
  %137 = vmatprep.mubr.bf16.mxu0 0
  %138 = vmatmul.mubr.bf16.gmra.mrb[0].mxu0 %v90
  %v139 = vpop.f32.mrb[0].mxu0
  %v140 = vadd.f32 %v36, %v139
  %v141 = vpop.f32.mrb[0].mxu0
  %v142 = vadd.f32 %v36, %v141
  %v143 = vpop.f32.mrb[0].mxu0
  %v144 = vpop.f32.mrb[0].mxu0
  %145 = vdwg.mxu0
  %146 = vmatprep.subr.bf16.mxu0 %v71
  %147 = vmatpush1.bf16.msra.mxu0 %v70
  %148 = vmatprep.subr.bf16.mxu0 %v75
  %149 = vmatpush1.bf16.msra.mxu0 %v74
  %150 = vmatprep.subr.bf16.mxu0 %v103
  %151 = vmatpush1.bf16.msra.mxu0 %v100
  %152 = vmatprep.subr.bf16.mxu0 0
  %153 = vmatpush1.bf16.msra.mxu0 0
  %154 = vmatprep.subr.bf16.mxu0 0
  %155 = vmatpush1.bf16.msra.mxu0 0
  %156 = vmatprep.subr.bf16.mxu0 0
  %157 = vmatpush1.bf16.msra.mxu0 0
  %158 = vmatprep.subr.bf16.mxu0 0
  %159 = vmatpush1.bf16.msra.mxu0 0
  %160 = vmatprep.subr.bf16.mxu0 0
  %161 = vmatpush1.bf16.msra.mxu0 0
  %162 = vmatprep.subr.bf16.mxu0 0
  %163 = vmatpush1.bf16.msra.mxu0 0
  %164 = vmatprep.subr.bf16.mxu0 0
  %165 = vmatpush1.bf16.msra.mxu0 0
  %166 = vmatprep.subr.bf16.mxu0 0
  %167 = vmatpush1.bf16.msra.mxu0 0
  %168 = vmatprep.subr.bf16.mxu0 0
  %169 = vmatpush1.bf16.msra.mxu0 0
  %170 = vmatprep.subr.bf16.mxu0 0
  %171 = vmatpush1.bf16.msra.mxu0 0
  %172 = vmatprep.subr.bf16.mxu0 0
  %173 = vmatpush1.bf16.msra.mxu0 0
  %174 = vmatprep.subr.bf16.mxu0 0
  %175 = vmatpush1.bf16.msra.mxu0 0
  %176 = vmatprep.subr.bf16.mxu0 0
  %177 = vmatpush1.bf16.msra.mxu0 0
  %178 = vmatprep.mubr.bf16.mxu0 0
  %179 = vmatmul.mubr.bf16.gmra.mrb[0].mxu0 %v90
  %v180 = vpop.f32.mrb[0].mxu0
  %v181 = vadd.f32 %v36, %v180
  %v182 = vpop.f32.mrb[0].mxu0
  %v183 = vadd.f32 %v36, %v182
  %v184 = vpop.f32.mrb[0].mxu0
  %v185 = vpop.f32.mrb[0].mxu0
  %186 = vdwg.mxu0
  %v187 = vlaneseq
  %v188 = vand.u32 %v187, 127
  %v189 = vadd.s32 %v188, 128
  %v190 = vadd.s32 %v188, 256
  %v191 = vadd.s32 %v188, 384
  %vm192 = vcmp.lt.s32.totalorder %v188, 512
  %vm193 = vcmp.lt.s32.totalorder %v189, 512
  %vm194 = vcmp.lt.s32.totalorder %v190, 512
  %vm195 = vcmp.lt.s32.totalorder %v191, 512
  %v196 = vsel %vm192, 1, 0
  %v197 = vsel %vm193, 1, 0
  %v198 = vsel %vm194, 1, 0
  %v199 = vsel %vm195, 1, 0
  %vm200 = vcmp.eq.s32.totalorder %v196, 1
  %vm201 = vcmp.eq.s32.totalorder %v197, 1
  %vm202 = vcmp.eq.s32.totalorder %v198, 1
  %vm203 = vcmp.eq.s32.totalorder %v199, 1
  %v204 = vsel %vm200, %v140, 0.0
  %v205 = vsel %vm201, %v142, 0.0
  %v206 = vsel %vm202, %v181, 0.0
  %v207 = vsel %vm203, %v183, 0.0
  %v208 = vadd.f32 %v204, %v205
  %v209 = vadd.f32 %v208, %v206
  %v210 = vadd.f32 %v209, %v207
  %211 = vadd.xlane.f32.xlu0 %v210
  %v212 = vpop.xlane.xlu0 %211
  %v213 = vmul.f32 %v212, 0.001953125
  %v214 = vsub.f32 %v140, %v213
  %v215 = vsub.f32 %v142, %v213
  %v216 = vsub.f32 %v181, %v213
  %v217 = vsub.f32 %v183, %v213
  %v218 = vsel %vm200, %v214, 0.0
  %v219 = vsel %vm201, %v215, 0.0
  %v220 = vsel %vm202, %v216, 0.0
  %v221 = vsel %vm203, %v217, 0.0
  %v222 = vmul.f32 %v218, %v218
  %v223 = vmul.f32 %v219, %v219
  %v224 = vmul.f32 %v220, %v220
  %v225 = vmul.f32 %v221, %v221
  %v226 = vadd.f32 %v222, %v223
  %v227 = vadd.f32 %v226, %v224
  %v228 = vadd.f32 %v227, %v225
  %229 = vadd.xlane.f32.xlu0 %v228
  %v230 = vpop.xlane.xlu0 %229
  %v231 = vmul.f32 %v230, 0.001953125
  %v232 = vld [vmem:[%s3] sm:$0xff]
  %v233 = vadd.f32 %v231, 1e-05
  %v234 = vrsqrt.pop %v233
  %v235 = vmul.f32 %v232, %v234
  %v236 = vld [vmem:[%s4] sm:$0xff]
  %v237 = vmul.f32 %v213, %v235
  %v238 = vsub.f32 %v236, %v237
  %240 = vset.pattern.permute.xlu0 0
  %241 = vperm.xlu0 %240, %v235
  %v242 = vpop.permute.xlu0 %241
  %v244 = vmul.f32 %v140, %v242
  %v245 = vmul.f32 %v142, %v242
  %v246 = vmul.f32 %v181, %v242
  %v247 = vmul.f32 %v183, %v242
  %249 = vset.pattern.permute.xlu0 0
  %250 = vperm.xlu0 %249, %v238
  %v251 = vpop.permute.xlu0 %250
  %v253 = vadd.f32 %v244, %v251
  %v254 = vadd.f32 %v245, %v251
  %v255 = vadd.f32 %v246, %v251
  %v256 = vadd.f32 %v247, %v251
  %257 = vst [vmem:[%s5] sm:$0xff] %v253
  %258 = vst [vmem:[%s5 + $0x8] sm:$0xff] %v254
  %259 = vst [vmem:[%s5 + $0x10] sm:$0xff] %v255
  %260 = vst [vmem:[%s5 + $0x18] sm:$0xff] %v256
  // Predicated region
  $region22: #{conv_block_forward.1} parent=0 // pred_check
    _
  $region23: #{conv_block_forward.1} parent=0 // pred_check_branch
    %262 = sbr.rel (0) target = $region25
  $region24: #{conv_block_forward.1} parent=0 // pred_region
    _
  $region25: #{conv_block_forward.1} parent=0 // pred_fallthru
    _
  // Predicated region
  $region26: #{conv_block_forward.1} parent=0 // pred_check
    _
  $region27: #{conv_block_forward.1} parent=0 // pred_check_branch
    %264 = sbr.rel (0) target = $region29
  $region28: #{conv_block_forward.1} parent=0 // pred_region
    _
  $region29: #{conv_block_forward.1} parent=0 // pred_fallthru
    _

</llo_original>
